<compile_context>
chip_gen: v6e
topology: v6e:2x2x1
jax: 0.10.0
libtpu: 0.0.40
codegen_flags: <defaults>
</compile_context>

<pallas_src>
import functools

import jax
import jax.numpy as jnp
from jax.experimental import pallas as pl
from jax.experimental.pallas import tpu as pltpu


def _shift_flat(x, shift):
    """x: (C, HW). Returns y with y[:, i] = x[:, i + shift], zeros past the end."""
    C, HW = x.shape
    if shift <= 0:
        return x
    if shift >= HW:
        return jnp.zeros_like(x)
    return jnp.concatenate(
        [x[:, shift:], jnp.zeros((C, shift), x.dtype)], axis=1)


def _deconv_instnorm_kernel(x_ref, w_ref, gb_ref, o_ref, *, eps, H, W, C_in, C_out):
    # x_ref : (1, C_in, H*W)      bf16  raw activation, spatial flattened on lanes
    # w_ref : (4*C_out, 4*C_in)   bf16  sub-pixel weight (rows phase-major, cols shift-major)
    # gb_ref: (C_out, 2)          f32   columns = [gamma, beta]
    # o_ref : (1, 4, C_out, H*W)  f32   per-phase output slabs (pixel-shuffled outside)
    HW = H * W
    x = x_ref[0]                                               # (C_in, HW)

    # In-VMEM "im2col": shifted copies of x for the {0,1}x{0,1} sub-pixel taps.
    # Row shifts come for free from the flat shift-by-W (the pad zeros the last
    # row); column shifts additionally mask out the wrapped-around last column.
    col = jax.lax.broadcasted_iota(jnp.int32, (C_in, HW), 1) % W
    keep_col = col < (W - 1)
    zero = jnp.zeros_like(x)
    x_l = jnp.where(keep_col, _shift_flat(x, 1), zero)         # x[c, q,   p+1]
    x_u = _shift_flat(x, W)                                    # x[c, q+1, p  ]
    x_ul = jnp.where(keep_col, _shift_flat(x, W + 1), zero)    # x[c, q+1, p+1]
    patches = jnp.concatenate([x, x_l, x_u, x_ul], axis=0)     # (4*C_in, HW)

    # Single fused MXU contraction producing all 4 output phases, f32 accumulation.
    conv = jnp.dot(w_ref[...], patches,
                   preferred_element_type=jnp.float32)         # (4*C_out, HW)

    # Instance-norm statistics: one pass (sum & sum-of-squares), per channel over
    # all 4 phases.  NOTE: the conv bias is intentionally not added -- a
    # per-channel bias before InstanceNorm is exactly cancelled by the mean
    # subtraction, so it is dead work.
    s1 = jnp.sum(conv, axis=1, keepdims=True)                  # (4*C_out, 1)
    s2 = jnp.sum(conv * conv, axis=1, keepdims=True)           # (4*C_out, 1)
    s1c = (s1[0:C_out] + s1[C_out:2 * C_out]
           + s1[2 * C_out:3 * C_out] + s1[3 * C_out:4 * C_out])   # (C_out, 1)
    s2c = (s2[0:C_out] + s2[C_out:2 * C_out]
           + s2[2 * C_out:3 * C_out] + s2[3 * C_out:4 * C_out])
    inv_n = 1.0 / (4.0 * HW)
    mean = s1c * inv_n
    var = s2c * inv_n - mean * mean                            # f32 one-pass variance
    inv = jax.lax.rsqrt(var + eps)

    gb = gb_ref[...]
    a = inv * gb[:, 0:1]                                       # folded scale
    b = gb[:, 1:2] - mean * a                                  # folded shift
    for ph in range(4):                                        # 4 lane-dense stores
        o_ref[0, ph] = conv[ph * C_out:(ph + 1) * C_out] * a + b


def _subpixel_weight(weight, kernel_size, stride, padding, output_padding):
    """Rearrange the ConvTranspose2d weight (C_in, C_out, K, K) into the
    (stride^2 * C_out, 4 * C_in) matrix used by the kernel.

    Row block ph = r_h*stride + r_w produces output pixels (s*q + r_h, s*p + r_w);
    column block j = dh*2 + dw multiplies the activation shifted by (dh, dw)."""
    C_in, C_out, K, _ = weight.shape
    pad_lo = K - 1 - padding
    w_all = jnp.zeros((stride * stride * C_out, 4 * C_in), jnp.float32)
    for r_h in range(stride):
        for r_w in range(stride):
            ph = r_h * stride + r_w
            for kh in range(K):                 # kh is the FLIPPED row tap index
                t_h = r_h + kh - pad_lo
                if t_h % stride != 0:
                    continue
                dh = t_h // stride
                for kw in range(K):
                    t_w = r_w + kw - pad_lo
                    if t_w % stride != 0:
                        continue
                    dw = t_w // stride
                    if not (0 <= dh <= 1 and 0 <= dw <= 1):
                        raise ValueError(
                            "geometry needs input shifts outside {0,1}^2; "
                            "unsupported by this kernel")
                    j = dh * 2 + dw
                    tap = weight[:, :, K - 1 - kh, K - 1 - kw]   # (C_in, C_out)
                    w_all = w_all.at[ph * C_out:(ph + 1) * C_out,
                                     j * C_in:(j + 1) * C_in].add(tap.T)
    return w_all


def deconv_layer(x_nchw, weight, bias, gamma, beta, *, kernel_size, stride,
                 output_padding, eps=1e-5):
    """ConvTranspose2d(padding=k//2, output_padding) + InstanceNorm2d(affine).
    NCHW in / NCHW out.  `bias` is accepted for API parity but never used:
    InstanceNorm's mean subtraction cancels a per-channel conv bias exactly."""
    del bias  # mathematically a no-op under instance norm
    # TODO(synk): norm='batch' / norm='None' variants of the module are not implemented.
    N, C_in, H, W = x_nchw.shape
    C_out = weight.shape[1]
    K = kernel_size
    pad = K // 2
    H_out = (H - 1) * stride - 2 * pad + K + output_padding
    W_out = (W - 1) * stride - 2 * pad + K + output_padding
    if stride != 2 or H_out != stride * H or W_out != stride * W:
        raise NotImplementedError(
            "kernel is specialised to stride=2 sub-pixel geometry "
            "(H_out = 2H, W_out = 2W)")
    HW = H * W

    # 1x activation HBM traffic: raw NCHW input, spatial flattened onto lanes, bf16.
    x_flat = x_nchw.reshape(N, C_in, HW).astype(jnp.bfloat16)
    w_all = _subpixel_weight(weight, K, stride, pad,
                             output_padding).astype(jnp.bfloat16)   # (4*C_out, 4*C_in)
    gb = jnp.stack([gamma, beta], axis=1).astype(jnp.float32)       # (C_out, 2)

    kernel = functools.partial(_deconv_instnorm_kernel, eps=eps, H=H, W=W,
                               C_in=C_in, C_out=C_out)

    out_ph = pl.pallas_call(
        kernel,
        out_shape=jax.ShapeDtypeStruct((N, 4, C_out, HW), jnp.float32),
        grid_spec=pltpu.PrefetchScalarGridSpec(
            num_scalar_prefetch=0,
            grid=(N,),
            in_specs=[
                pl.BlockSpec((1, C_in, HW), lambda n: (n, 0, 0)),
                pl.BlockSpec((4 * C_out, 4 * C_in), lambda n: (0, 0)),
                pl.BlockSpec((C_out, 2), lambda n: (0, 0)),
            ],
            out_specs=pl.BlockSpec((1, 4, C_out, HW), lambda n: (n, 0, 0, 0)),
        ),
        compiler_params=pltpu.CompilerParams(
            dimension_semantics=("parallel",)),
    )(x_flat, w_all, gb)

    # Pixel shuffle of the 4 phase slabs into NCHW (touches output bytes only).
    out = out_ph.reshape(N, stride, stride, C_out, H, W)
    out = jnp.transpose(out, (0, 3, 4, 1, 5, 2)).reshape(N, C_out, H_out, W_out)
    return out


def _reference(x, weight, bias, gamma, beta, *, kernel_size, stride,
               output_padding, eps=1e-5):
    """Independent pure-JAX reference (direct scatter form of ConvTranspose2d)."""
    N, C_in, H, W = x.shape
    C_out = weight.shape[1]
    K = kernel_size
    pad = K // 2
    H_out = (H - 1) * stride - 2 * pad + K + output_padding
    W_out = (W - 1) * stride - 2 * pad + K + output_padding
    Hf = (H - 1) * stride + K
    Wf = (W - 1) * stride + K
    yf = jnp.zeros((N, C_out, Hf, Wf), jnp.float32)
    for kh in range(K):
        for kw in range(K):
            contrib = jnp.einsum('nihw,io->nohw', x, weight[:, :, kh, kw])
            yf = yf.at[:, :, kh:kh + (H - 1) * stride + 1:stride,
                       kw:kw + (W - 1) * stride + 1:stride].add(contrib)
    y = yf[:, :, pad:pad + H_out, pad:pad + W_out] + bias[None, :, None, None]
    mean = y.mean(axis=(2, 3), keepdims=True)
    var = ((y - mean) ** 2).mean(axis=(2, 3), keepdims=True)
    return ((y - mean) / jnp.sqrt(var + eps)) * gamma[None, :, None, None] \
        + beta[None, :, None, None]


if __name__ == "__main__":
    # Module config: DeconvLayer(in_channels=4, out_channels=8, kernel_size=3,
    #                            stride=2, output_padding=1, norm='instance')
    in_channels, out_channels = 4, 8
    kernel_size, stride, output_padding = 3, 2, 1

    key = jax.random.PRNGKey(0)
    kx, kw, kb, kg, kbe = jax.random.split(key, 5)

    x = jax.random.normal(kx, (2, in_channels, 16, 16), jnp.float32)   # NCHW
    # ConvTranspose2d weight layout: (in_channels, out_channels, kH, kW)
    weight = 0.1 * jax.random.normal(
        kw, (in_channels, out_channels, kernel_size, kernel_size), jnp.float32)
    bias = 0.1 * jax.random.normal(kb, (out_channels,), jnp.float32)
    gamma = 1.0 + 0.1 * jax.random.normal(kg, (out_channels,), jnp.float32)
    beta = 0.1 * jax.random.normal(kbe, (out_channels,), jnp.float32)

    out = deconv_layer(x, weight, bias, gamma, beta,
                       kernel_size=kernel_size, stride=stride,
                       output_padding=output_padding)
    out = jax.block_until_ready(out)

    # The kernel feeds bf16 operands to the MXU (f32 accumulation), so compare
    # against the reference evaluated on bf16-rounded inputs.  The reference
    # DOES add the conv bias; matching outputs also verify that InstanceNorm
    # cancels it exactly.
    x_q = x.astype(jnp.bfloat16).astype(jnp.float32)
    w_q = weight.astype(jnp.bfloat16).astype(jnp.float32)
    ref = _reference(x_q, w_q, bias, gamma, beta,
                     kernel_size=kernel_size, stride=stride,
                     output_padding=output_padding)
    assert out.shape == ref.shape == (2, out_channels, 32, 32)
    assert jnp.allclose(out, ref, atol=2e-3, rtol=2e-3), \
        float(jnp.max(jnp.abs(out - ref)))

    print("KERNEL_OK")
</pallas_src>

<mosaic_0001>
module attributes {stable_mosaic.version = 11 : i64} {
  func.func @_deconv_instnorm_kernel(%arg0: i32, %arg1: memref<1x4x256xbf16, #tpu.memory_space<vmem>>, %arg2: memref<32x16xbf16, #tpu.memory_space<vmem>>, %arg3: memref<8x2xf32, #tpu.memory_space<vmem>>, %arg4: memref<1x4x8x256xf32, #tpu.memory_space<vmem>>) attributes {dimension_semantics = [#tpu.dimension_semantics<parallel>], iteration_bounds = array<i64: 2>, scalar_prefetch = 0 : i64, scratch_operands = 0 : i64, tpu.core_type = #tpu.core_type<tc>, window_params = [{transform_indices = @transform_0, window_bounds = array<i64: 1, 4, 256>}, {pipeline_mode = #tpu.pipeline_mode<synchronous>, transform_indices = @transform_1, window_bounds = array<i64: 32, 16>}, {pipeline_mode = #tpu.pipeline_mode<synchronous>, transform_indices = @transform_2, window_bounds = array<i64: 8, 2>}, {transform_indices = @transform_3, window_bounds = array<i64: 1, 4, 8, 256>}]} {
    %c0 = arith.constant 0 : index
    %c0_0 = arith.constant 0 : index
    %c0_1 = arith.constant 0 : index
    %0 = vector.load %arg1[%c0, %c0_0, %c0_1] : memref<1x4x256xbf16, #tpu.memory_space<vmem>>, vector<1x4x256xbf16>
    %1 = vector.shape_cast %0 : vector<1x4x256xbf16> to vector<4x256xbf16>
    %2 = tpu.iota {dimensions = array<i32: 1>} : vector<4x256xi32>
    %c16_i32 = arith.constant 16 : i32
    %c0_i32 = arith.constant 0 : i32
    %3 = arith.cmpi eq, %c16_i32, %c0_i32 : i32
    %c1_i32 = arith.constant 1 : i32
    %4 = arith.select %3, %c1_i32, %c16_i32 : i32
    %5 = vector.broadcast %4 : i32 to vector<4x256xi32>
    %6 = arith.remsi %2, %5 : vector<4x256xi32>
    %c0_i32_2 = arith.constant 0 : i32
    %7 = vector.broadcast %c0_i32_2 : i32 to vector<4x256xi32>
    %8 = arith.cmpi ne, %6, %7 : vector<4x256xi32>
    %c0_i32_3 = arith.constant 0 : i32
    %9 = vector.broadcast %c0_i32_3 : i32 to vector<4x256xi32>
    %10 = arith.cmpi slt, %6, %9 : vector<4x256xi32>
    %c0_i32_4 = arith.constant 0 : i32
    %11 = arith.cmpi slt, %4, %c0_i32_4 : i32
    %12 = vector.broadcast %11 : i1 to vector<4x256xi1>
    %13 = vector.broadcast %12 : vector<4x256xi1> to vector<4x256xi1>
    %14 = arith.xori %10, %13 : vector<4x256xi1>
    %15 = arith.andi %14, %8 : vector<4x256xi1>
    %16 = vector.broadcast %4 : i32 to vector<4x256xi32>
    %17 = arith.addi %6, %16 : vector<4x256xi32>
    %18 = arith.select %15, %17, %6 : vector<4x256xi1>, vector<4x256xi32>
    %c15_i32 = arith.constant 15 : i32
    %19 = vector.broadcast %c15_i32 : i32 to vector<4x256xi32>
    %20 = arith.cmpi slt, %18, %19 : vector<4x256xi32>
    %cst = arith.constant 0.000000e+00 : bf16
    %21 = vector.broadcast %cst : bf16 to vector<4x256xbf16>
    %22 = vector.extract_strided_slice %1 {offsets = [0, 1], sizes = [4, 255], strides = [1, 1]} : vector<4x256xbf16> to vector<4x255xbf16>
    %cst_5 = arith.constant 0.000000e+00 : bf16
    %23 = vector.broadcast %cst_5 : bf16 to vector<4x1xbf16>
    %24 = tpu.concatenate %22, %23 in 1 : vector<4x255xbf16>, vector<4x1xbf16> -> vector<4x256xbf16>
    %25 = arith.select %20, %24, %21 : vector<4x256xi1>, vector<4x256xbf16>
    %26 = vector.extract_strided_slice %1 {offsets = [0, 16], sizes = [4, 240], strides = [1, 1]} : vector<4x256xbf16> to vector<4x240xbf16>
    %cst_6 = arith.constant 0.000000e+00 : bf16
    %27 = vector.broadcast %cst_6 : bf16 to vector<4x16xbf16>
    %28 = tpu.concatenate %26, %27 in 1 : vector<4x240xbf16>, vector<4x16xbf16> -> vector<4x256xbf16>
    %29 = vector.extract_strided_slice %1 {offsets = [0, 17], sizes = [4, 239], strides = [1, 1]} : vector<4x256xbf16> to vector<4x239xbf16>
    %cst_7 = arith.constant 0.000000e+00 : bf16
    %30 = vector.broadcast %cst_7 : bf16 to vector<4x17xbf16>
    %31 = tpu.concatenate %29, %30 in 1 : vector<4x239xbf16>, vector<4x17xbf16> -> vector<4x256xbf16>
    %32 = arith.select %20, %31, %21 : vector<4x256xi1>, vector<4x256xbf16>
    %33 = tpu.concatenate %1, %25, %28, %32 in 0 : vector<4x256xbf16>, vector<4x256xbf16>, vector<4x256xbf16>, vector<4x256xbf16> -> vector<16x256xbf16>
    %c0_8 = arith.constant 0 : index
    %c0_9 = arith.constant 0 : index
    %34 = vector.load %arg2[%c0_8, %c0_9] : memref<32x16xbf16, #tpu.memory_space<vmem>>, vector<32x16xbf16>
    %cst_10 = arith.constant dense<0.000000e+00> : vector<32x256xf32>
    %35 = tpu.matmul %34, %33, %cst_10 {dimension_numbers = #tpu.dot_dimension_numbers<[1], [0], [0], [1], [0, 0, 1, 1], [], []>} : vector<32x16xbf16>, vector<16x256xbf16>, vector<32x256xf32> -> vector<32x256xf32>
    %cst_11 = arith.constant dense<0.000000e+00> : vector<32xf32>
    %36 = vector.multi_reduction <add>, %35, %cst_11 [1] : vector<32x256xf32> to vector<32xf32>
    %37 = vector.shape_cast %36 : vector<32xf32> to vector<32x1xf32>
    %38 = arith.mulf %35, %35 : vector<32x256xf32>
    %cst_12 = arith.constant dense<0.000000e+00> : vector<32xf32>
    %39 = vector.multi_reduction <add>, %38, %cst_12 [1] : vector<32x256xf32> to vector<32xf32>
    %40 = vector.shape_cast %39 : vector<32xf32> to vector<32x1xf32>
    %41 = vector.extract_strided_slice %37 {offsets = [0, 0], sizes = [8, 1], strides = [1, 1]} : vector<32x1xf32> to vector<8x1xf32>
    %42 = vector.extract_strided_slice %37 {offsets = [8, 0], sizes = [8, 1], strides = [1, 1]} : vector<32x1xf32> to vector<8x1xf32>
    %43 = arith.addf %41, %42 : vector<8x1xf32>
    %44 = vector.extract_strided_slice %37 {offsets = [16, 0], sizes = [8, 1], strides = [1, 1]} : vector<32x1xf32> to vector<8x1xf32>
    %45 = arith.addf %43, %44 : vector<8x1xf32>
    %46 = vector.extract_strided_slice %37 {offsets = [24, 0], sizes = [8, 1], strides = [1, 1]} : vector<32x1xf32> to vector<8x1xf32>
    %47 = arith.addf %45, %46 : vector<8x1xf32>
    %48 = vector.extract_strided_slice %40 {offsets = [0, 0], sizes = [8, 1], strides = [1, 1]} : vector<32x1xf32> to vector<8x1xf32>
    %49 = vector.extract_strided_slice %40 {offsets = [8, 0], sizes = [8, 1], strides = [1, 1]} : vector<32x1xf32> to vector<8x1xf32>
    %50 = arith.addf %48, %49 : vector<8x1xf32>
    %51 = vector.extract_strided_slice %40 {offsets = [16, 0], sizes = [8, 1], strides = [1, 1]} : vector<32x1xf32> to vector<8x1xf32>
    %52 = arith.addf %50, %51 : vector<8x1xf32>
    %53 = vector.extract_strided_slice %40 {offsets = [24, 0], sizes = [8, 1], strides = [1, 1]} : vector<32x1xf32> to vector<8x1xf32>
    %54 = arith.addf %52, %53 : vector<8x1xf32>
    %cst_13 = arith.constant 9.765625E-4 : f32
    %55 = vector.broadcast %cst_13 : f32 to vector<8x1xf32>
    %56 = arith.mulf %47, %55 : vector<8x1xf32>
    %cst_14 = arith.constant 9.765625E-4 : f32
    %57 = vector.broadcast %cst_14 : f32 to vector<8x1xf32>
    %58 = arith.mulf %54, %57 : vector<8x1xf32>
    %59 = arith.mulf %56, %56 : vector<8x1xf32>
    %60 = arith.subf %58, %59 : vector<8x1xf32>
    %cst_15 = arith.constant 9.99999974E-6 : f32
    %61 = vector.broadcast %cst_15 : f32 to vector<8x1xf32>
    %62 = arith.addf %60, %61 : vector<8x1xf32>
    %63 = math.rsqrt %62 : vector<8x1xf32>
    %c0_16 = arith.constant 0 : index
    %c0_17 = arith.constant 0 : index
    %64 = vector.load %arg3[%c0_16, %c0_17] : memref<8x2xf32, #tpu.memory_space<vmem>>, vector<8x2xf32>
    %65 = vector.extract_strided_slice %64 {offsets = [0, 0], sizes = [8, 1], strides = [1, 1]} : vector<8x2xf32> to vector<8x1xf32>
    %66 = arith.mulf %63, %65 : vector<8x1xf32>
    %67 = vector.extract_strided_slice %64 {offsets = [0, 1], sizes = [8, 1], strides = [1, 1]} : vector<8x2xf32> to vector<8x1xf32>
    %68 = arith.mulf %56, %66 : vector<8x1xf32>
    %69 = arith.subf %67, %68 : vector<8x1xf32>
    %70 = vector.extract_strided_slice %35 {offsets = [0, 0], sizes = [8, 256], strides = [1, 1]} : vector<32x256xf32> to vector<8x256xf32>
    %71 = vector.broadcast %66 : vector<8x1xf32> to vector<8x256xf32>
    %72 = arith.mulf %70, %71 : vector<8x256xf32>
    %73 = vector.broadcast %69 : vector<8x1xf32> to vector<8x256xf32>
    %74 = arith.addf %72, %73 : vector<8x256xf32>
    %c0_18 = arith.constant 0 : index
    %c0_19 = arith.constant 0 : index
    %c0_20 = arith.constant 0 : index
    %c0_21 = arith.constant 0 : index
    %75 = vector.load %arg4[%c0_18, %c0_19, %c0_20, %c0_21] : memref<1x4x8x256xf32, #tpu.memory_space<vmem>>, vector<1x1x8x256xf32>
    %76 = vector.shape_cast %75 : vector<1x1x8x256xf32> to vector<8x256xf32>
    %77 = vector.shape_cast %74 : vector<8x256xf32> to vector<1x1x8x256xf32>
    tpu.vector_store %arg4[%c0_18, %c0_19, %c0_20, %c0_21], %77 {strides = array<i32>} : memref<1x4x8x256xf32, #tpu.memory_space<vmem>>, vector<1x1x8x256xf32>,
    %78 = vector.extract_strided_slice %35 {offsets = [8, 0], sizes = [8, 256], strides = [1, 1]} : vector<32x256xf32> to vector<8x256xf32>
    %79 = vector.broadcast %66 : vector<8x1xf32> to vector<8x256xf32>
    %80 = arith.mulf %78, %79 : vector<8x256xf32>
    %81 = vector.broadcast %69 : vector<8x1xf32> to vector<8x256xf32>
    %82 = arith.addf %80, %81 : vector<8x256xf32>
    %c0_22 = arith.constant 0 : index
    %c1 = arith.constant 1 : index
    %c0_23 = arith.constant 0 : index
    %c0_24 = arith.constant 0 : index
    %83 = vector.load %arg4[%c0_22, %c1, %c0_23, %c0_24] : memref<1x4x8x256xf32, #tpu.memory_space<vmem>>, vector<1x1x8x256xf32>
    %84 = vector.shape_cast %83 : vector<1x1x8x256xf32> to vector<8x256xf32>
    %85 = vector.shape_cast %82 : vector<8x256xf32> to vector<1x1x8x256xf32>
    tpu.vector_store %arg4[%c0_22, %c1, %c0_23, %c0_24], %85 {strides = array<i32>} : memref<1x4x8x256xf32, #tpu.memory_space<vmem>>, vector<1x1x8x256xf32>,
    %86 = vector.extract_strided_slice %35 {offsets = [16, 0], sizes = [8, 256], strides = [1, 1]} : vector<32x256xf32> to vector<8x256xf32>
    %87 = vector.broadcast %66 : vector<8x1xf32> to vector<8x256xf32>
    %88 = arith.mulf %86, %87 : vector<8x256xf32>
    %89 = vector.broadcast %69 : vector<8x1xf32> to vector<8x256xf32>
    %90 = arith.addf %88, %89 : vector<8x256xf32>
    %c0_25 = arith.constant 0 : index
    %c2 = arith.constant 2 : index
    %c0_26 = arith.constant 0 : index
    %c0_27 = arith.constant 0 : index
    %91 = vector.load %arg4[%c0_25, %c2, %c0_26, %c0_27] : memref<1x4x8x256xf32, #tpu.memory_space<vmem>>, vector<1x1x8x256xf32>
    %92 = vector.shape_cast %91 : vector<1x1x8x256xf32> to vector<8x256xf32>
    %93 = vector.shape_cast %90 : vector<8x256xf32> to vector<1x1x8x256xf32>
    tpu.vector_store %arg4[%c0_25, %c2, %c0_26, %c0_27], %93 {strides = array<i32>} : memref<1x4x8x256xf32, #tpu.memory_space<vmem>>, vector<1x1x8x256xf32>,
    %94 = vector.extract_strided_slice %35 {offsets = [24, 0], sizes = [8, 256], strides = [1, 1]} : vector<32x256xf32> to vector<8x256xf32>
    %95 = vector.broadcast %66 : vector<8x1xf32> to vector<8x256xf32>
    %96 = arith.mulf %94, %95 : vector<8x256xf32>
    %97 = vector.broadcast %69 : vector<8x1xf32> to vector<8x256xf32>
    %98 = arith.addf %96, %97 : vector<8x256xf32>
    %c0_28 = arith.constant 0 : index
    %c3 = arith.constant 3 : index
    %c0_29 = arith.constant 0 : index
    %c0_30 = arith.constant 0 : index
    %99 = vector.load %arg4[%c0_28, %c3, %c0_29, %c0_30] : memref<1x4x8x256xf32, #tpu.memory_space<vmem>>, vector<1x1x8x256xf32>
    %100 = vector.shape_cast %99 : vector<1x1x8x256xf32> to vector<8x256xf32>
    %101 = vector.shape_cast %98 : vector<8x256xf32> to vector<1x1x8x256xf32>
    tpu.vector_store %arg4[%c0_28, %c3, %c0_29, %c0_30], %101 {strides = array<i32>} : memref<1x4x8x256xf32, #tpu.memory_space<vmem>>, vector<1x1x8x256xf32>,
    return
  }
  func.func @transform_0(%arg0: i32) -> (i32, i32, i32) {
    %c0_i32 = arith.constant 0 : i32
    %c0_i32_0 = arith.constant 0 : i32
    %c0_i32_1 = arith.constant 0 : i32
    return %arg0, %c0_i32, %c0_i32_0 : i32, i32, i32
  }
  func.func @transform_1(%arg0: i32) -> (i32, i32) {
    %c0_i32 = arith.constant 0 : i32
    %c0_i32_0 = arith.constant 0 : i32
    %c0_i32_1 = arith.constant 0 : i32
    return %c0_i32, %c0_i32_0 : i32, i32
  }
  func.func @transform_2(%arg0: i32) -> (i32, i32) {
    %c0_i32 = arith.constant 0 : i32
    %c0_i32_0 = arith.constant 0 : i32
    %c0_i32_1 = arith.constant 0 : i32
    return %c0_i32, %c0_i32_0 : i32, i32
  }
  func.func @transform_3(%arg0: i32) -> (i32, i32, i32, i32) {
    %c0_i32 = arith.constant 0 : i32
    %c0_i32_0 = arith.constant 0 : i32
    %c0_i32_1 = arith.constant 0 : i32
    %c0_i32_2 = arith.constant 0 : i32
    return %arg0, %c0_i32, %c0_i32_0, %c0_i32_1 : i32, i32, i32, i32
  }
}

</mosaic_0001>

<llo_original>
// kernel: tpu_custom_call.1
$region0: #{tpu_custom_call.1}
  #allocation0 [shape = 'u32[]', space=smem, size = 0x4, offset = 0x4, fixed_abs, tag = 'smem constant byte address 0x4 - core index']
  #allocation1 [shape = 'u32[144,128]{1,0:T(1,128)}', space=vmem, size = 0x12000, scoped, tag = 'internal scratch']
  %s0 = inlined_call_operand.vmem [shape: bf16[2,4,256], index: 0, kind: input, shape index: {}]
  %s1 = inlined_call_operand.vmem [shape: bf16[32,16], index: 1, kind: input, shape index: {}]
  %s2 = inlined_call_operand.vmem [shape: f32[8,2], index: 2, kind: input, shape index: {}]
  %s3 = inlined_call_operand.hbm [shape: f32[2,4,8,256], index: 3, kind: output, shape index: {}]
  %s4 = sld [smem:[#allocation0]]
  $region45: #{tpu_custom_call.1} parent=0
    _
  %s6 = ssub.s32 1, %s4
  %s7 = scalar_select 0, %s6, %s4
  $region1: #{tpu_custom_call.1} parent=0
    #allocation2 [shape = 'u8[65536]{0}', space=vmem, size = 0x10000, scoped, tag = 'output window, operand 0']
    #allocation3 [shape = 's32[2]{0}', space=sflag, size = 0x8, scoped, tag = 'scoped memory for tpu_custom_call.1']
    %8 = vsyncpa [#allocation3], 0
    %s9 = scalar_lea.sflag [#allocation3], 1
    %10 = vsyncpa %s9, 0
    loop: start=0, step=1, limit=4
    $region2: #{tpu_custom_call.1} parent=1 // loop_pre_header
      _
    $region3: #{tpu_custom_call.1} parent=1 // loop_header
      %s12 = sphi 0, %s16
      %p13 = scmp.ge.s32.totalorder %s12, 4
      %s22 = sphi 0, %s24
      %s25 = sphi 0, %s22
      %s26 = sphi 0, %s25
      %s42 = sphi 0, %s26
      %s46 = sphi 0, %s46
      %s48 = sphi 0, %s46
      %s49 = sphi 0, %s48
      %s63 = sphi 0, %s49
      %s67 = sphi 0, %s67
      %s69 = sphi 0, %s67
      %s70 = sphi 0, %s69
      %s84 = sphi 0, %s70
      %s90 = sphi 0, %s92
      %s93 = sphi 0, %s90
      %s94 = sphi 0, %s93
      %s110 = sphi 0, %s94
    $region4: #{tpu_custom_call.1} parent=1 // loop_header_branch
      %15 = sbr.rel (%p13) target = $region8
    $region5: #{tpu_custom_call.1} parent=1 // loop_body
      %s17 = ssub.s32 %s12, 1
      %s18 = ssub.s32 %s12, 2
      %s19 = sadd.s32 %s12, 1
      %s20 = ssub.s32 %s12, %s19
      %p21 = scmp.eq.s32.totalorder %s20, 0
      %s23 = sadd.s32 %s22, 1
      %s24 = scalar_select %p21, %s22, %s23
      %p27 = pneg %p21
      %p28 = scmp.eq.s32.totalorder %s12, 1
      %p29 = por %p27, %p28
      %p30 = scmp.ne.s32.totalorder %s22, %s25
      %p31 = scmp.eq.s32.totalorder %s12, 0
      %p32 = por %p30, %p31
      %p33 = scmp.ne.s32.totalorder %s22, %s25
      %p34 = scmp.eq.s32.totalorder %s17, 1
      %p35 = por %p33, %p34
      %p36 = scmp.ne.s32.totalorder %s25, %s26
      %p37 = scmp.eq.s32.totalorder %s17, 0
      %p38 = por %p36, %p37
      %p39 = scmp.ne.s32.totalorder %s25, %s26
      %p40 = scmp.eq.s32.totalorder %s18, 1
      %p41 = por %p39, %p40
      %p43 = scmp.ne.s32.totalorder %s26, %s42
      %p44 = scmp.eq.s32.totalorder %s18, 0
      %p45 = por %p43, %p44
      %s47 = sadd.s32 %s46, 1
      %p50 = scmp.eq.s32.totalorder %s12, 1
      %p51 = scmp.ne.s32.totalorder %s46, %s48
      %p52 = scmp.eq.s32.totalorder %s12, 0
      %p53 = por %p51, %p52
      %p54 = scmp.ne.s32.totalorder %s46, %s48
      %p55 = scmp.eq.s32.totalorder %s17, 1
      %p56 = por %p54, %p55
      %p57 = scmp.ne.s32.totalorder %s48, %s49
      %p58 = scmp.eq.s32.totalorder %s17, 0
      %p59 = por %p57, %p58
      %p60 = scmp.ne.s32.totalorder %s48, %s49
      %p61 = scmp.eq.s32.totalorder %s18, 1
      %p62 = por %p60, %p61
      %p64 = scmp.ne.s32.totalorder %s49, %s63
      %p65 = scmp.eq.s32.totalorder %s18, 0
      %p66 = por %p64, %p65
      %s68 = sadd.s32 %s67, 1
      %p71 = scmp.eq.s32.totalorder %s12, 1
      %p72 = scmp.ne.s32.totalorder %s67, %s69
      %p73 = scmp.eq.s32.totalorder %s12, 0
      %p74 = por %p72, %p73
      %p75 = scmp.ne.s32.totalorder %s67, %s69
      %p76 = scmp.eq.s32.totalorder %s17, 1
      %p77 = por %p75, %p76
      %p78 = scmp.ne.s32.totalorder %s69, %s70
      %p79 = scmp.eq.s32.totalorder %s17, 0
      %p80 = por %p78, %p79
      %p81 = scmp.ne.s32.totalorder %s69, %s70
      %p82 = scmp.eq.s32.totalorder %s18, 1
      %p83 = por %p81, %p82
      %p85 = scmp.ne.s32.totalorder %s70, %s84
      %p86 = scmp.eq.s32.totalorder %s18, 0
      %p87 = por %p85, %p86
      %s88 = ssub.s32 %s12, %s19
      %p89 = scmp.eq.s32.totalorder %s88, 0
      %s91 = sadd.s32 %s90, 1
      %s92 = scalar_select %p89, %s90, %s91
      %p95 = pneg %p89
      %p96 = scmp.eq.s32.totalorder %s12, 1
      %p97 = por %p95, %p96
      %p98 = scmp.ne.s32.totalorder %s90, %s93
      %p99 = scmp.eq.s32.totalorder %s12, 0
      %p100 = por %p98, %p99
      %p101 = scmp.ne.s32.totalorder %s90, %s93
      %p102 = scmp.eq.s32.totalorder %s17, 1
      %p103 = por %p101, %p102
      %p104 = scmp.ne.s32.totalorder %s93, %s94
      %p105 = scmp.eq.s32.totalorder %s17, 0
      %p106 = por %p104, %p105
      %p107 = scmp.ne.s32.totalorder %s93, %s94
      %p108 = scmp.eq.s32.totalorder %s18, 1
      %p109 = por %p107, %p108
      %p111 = scmp.ne.s32.totalorder %s94, %s110
      %p112 = scmp.eq.s32.totalorder %s18, 0
      %p113 = por %p111, %p112
      %p114 = scmp.le.s32.totalorder 1, %s12
      %p115 = scmp.lt.s32.totalorder %s12, 3
      %p116 = pnand %p114, %p115
      %p117 = pneg %p116
      // Predicated region
      $region9: #{tpu_custom_call.1} parent=5 // pred_check
        _
      $region10: #{tpu_custom_call.1} parent=5 // pred_check_branch
        %119 = sbr.rel (%p116) target = $region12
      $region11: #{tpu_custom_call.1} parent=5 // pred_region
        %s120 = ssub.s32 %s12, 1
        // Predicated region
        $region13: #{tpu_custom_call.1} parent=11 // pred_check
          %p121 = pneg %p59
        $region14: #{tpu_custom_call.1} parent=11 // pred_check_branch
          %123 = sbr.rel (%p121) target = $region16
        $region15: #{tpu_custom_call.1} parent=11 // pred_region
          _
        $region16: #{tpu_custom_call.1} parent=11 // pred_fallthru
          _
        // Predicated region
        $region17: #{tpu_custom_call.1} parent=11 // pred_check
          %p124 = pneg %p80
        $region18: #{tpu_custom_call.1} parent=11 // pred_check_branch
          %126 = sbr.rel (%p124) target = $region20
        $region19: #{tpu_custom_call.1} parent=11 // pred_region
          _
        $region20: #{tpu_custom_call.1} parent=11 // pred_fallthru
          _
      $region12: #{tpu_custom_call.1} parent=5 // pred_fallthru
        _
      %p127 = scmp.lt.s32.totalorder %s12, 2
      // Predicated region
      $region21: #{tpu_custom_call.1} parent=5 // pred_check
        %p128 = pneg %p127
      $region22: #{tpu_custom_call.1} parent=5 // pred_check_branch
        %130 = sbr.rel (%p128) target = $region24
      $region23: #{tpu_custom_call.1} parent=5 // pred_region
        // Predicated region
        $region25: #{tpu_custom_call.1} parent=23 // pred_check
          %p131 = pneg %p32
        $region26: #{tpu_custom_call.1} parent=23 // pred_check_branch
          %133 = sbr.rel (%p131) target = $region28
        $region27: #{tpu_custom_call.1} parent=23 // pred_region
          %p134 = scmp.lt.s32.totalorder %s12, 1
          %s135 = scalar_select %p134, %s12, 1
          %s136 = smul.addr %s135, 2
          %s137 = smul.addr %s136, 2
          %s138 = scalar_lea.vmem %s0, %s137
        $region28: #{tpu_custom_call.1} parent=23 // pred_fallthru
          _
      $region24: #{tpu_custom_call.1} parent=5 // pred_fallthru
        _
      %p139 = scmp.le.s32.totalorder 1, %s12
      %p140 = scmp.lt.s32.totalorder %s12, 3
      %p141 = pnand %p139, %p140
      %p142 = pneg %p141
      // Predicated region
      $region29: #{tpu_custom_call.1} parent=5 // pred_check
        _
      $region30: #{tpu_custom_call.1} parent=5 // pred_check_branch
        %144 = sbr.rel (%p141) target = $region32
      $region31: #{tpu_custom_call.1} parent=5 // pred_region
        %s145 = ssub.s32 %s12, 1
        %p146 = scmp.lt.s32.totalorder %s17, 1
        %s147 = scalar_select %p146, %s17, 1
        %s148 = smul.addr %s147, 2
        %s149 = smul.addr %s148, 2
        %s150 = scalar_lea.vmem %s0, %s149
        %p151 = pneg %p38
        %p152 = pneg %p35
        %p153 = pneg %p59
        %p154 = pneg %p56
        %p155 = pneg %p80
        %p156 = pneg %p77
        %p157 = pneg %p106
        %p158 = pneg %p103
        %s159 = sand.u32 %s93, 1
        %s160 = scalar_lea.sflag [#allocation3], %s159
        %s161 = sand.u32 %s93, 1
        %s162 = smul.addr %s161, 64
        %s163 = scalar_lea.vmem [#allocation2], %s162
        %p164 = scmp.lt.s32.totalorder %s17, 1
        %s165 = scalar_select %p164, %s17, 1
        %s166 = smul.addr %s165, 2
        %s167 = smul.addr %s166, 2
        %s168 = scalar_lea.vmem %s0, %s167
        %v172 = vld [vmem:[%s168] sm:$0xf]
        %v173 = vlaneseq
        %v174 = vand.u32 %v173, 127
        %v175 = vadd.s32 %v174, 128
        %vm176 = vcmp.lt.s32.totalorder %v174, 0
        %v177 = vsub.s32 0, %v174
        %v178 = vsel %vm176, %v177, %v174
        %v179 = vshrl.u32 %v178, 4
        %v180 = vand.u32 %v178, 15
        %v181 = vsub.s32 0, %v180
        %v182 = vsel %vm176, %v181, %v180
        %vm183 = vcmp.lt.s32.totalorder %v175, 0
        %v184 = vsub.s32 0, %v175
        %v185 = vsel %vm183, %v184, %v175
        %v186 = vshrl.u32 %v185, 4
        %v187 = vand.u32 %v185, 15
        %v188 = vsub.s32 0, %v187
        %v189 = vsel %vm183, %v188, %v187
        %vm190 = vcmp.ne.s32.totalorder %v182, 0
        %vm191 = vcmp.ne.s32.totalorder %v189, 0
        %vm192 = vcmp.lt.s32.totalorder %v182, 0
        %vm193 = vcmp.lt.s32.totalorder %v189, 0
        %vm194 = vmand %vm192, %vm190
        %vm195 = vmand %vm193, %vm191
        %v196 = vadd.s32 %v182, 16
        %v197 = vadd.s32 %v189, 16
        %v198 = vsel %vm194, %v196, %v182
        %v199 = vsel %vm195, %v197, %v189
        %vm200 = vcmp.lt.s32.totalorder %v198, 15
        %vm201 = vcmp.lt.s32.totalorder %v199, 15
        %v204 = vunpack.c.l.s4 1983009808
        %v205 = vunpack.c.0.s8 %v204
        %v206 = vlaneseq
        %v207 = vshrl.u32 %v206, 7
        %v208 = vsub.s32 %v205, %v207
        %v209 = vrot.slane %v172, %v208
        %v210 = vcombine.high %v209, %v209
        %211 = vrot.lane.b32.xlu0 %v209, 127
        %v212 = vpop.permute.xlu0 %211
        %213 = vrot.lane.b32.xlu0 %v210, 127
        %v214 = vpop.permute.xlu0 %213
        %vm215 = vcmask 1039360
        %v216 = vsel %vm215, %v212, %v214
        %vm218 = vcmask 1039360
        %v221 = vsel %vm218, %v214, 0
        %vm223 = vmpackc.low %vm201, %vm200
        %v224 = vsel %vm223, 65537, 0
        %v225 = vlaneseq
        %v226 = vshrl.u32 %v225, 7
        %v227 = vsub.s32 0, %v226
        %v228 = vrot.slane %v224, %v227
        %v229 = vlaneseq
        %v230 = vshrl.u32 %v229, 7
        %v231 = vsub.s32 4, %v230
        %v232 = vrot.slane %v224, %v231
        %vm233 = vcmp.ne.s16.totalorder %v228, 0
        %vm234 = vcmp.ne.s16.totalorder %v232, 0
        %v235 = vsel %vm233, %v216, 0
        %v236 = vsel %vm234, %v221, 0
        %237 = vrot.lane.b32.xlu0 %v209, 112
        %v238 = vpop.permute.xlu0 %237
        %239 = vrot.lane.b32.xlu0 %v210, 112
        %v240 = vpop.permute.xlu0 %239
        %vm241 = vcmask 916480
        %v242 = vsel %vm241, %v238, %v240
        %vm243 = vcmask 916480
        %v245 = vsel %vm243, %v240, 0
        %246 = vrot.lane.b32.xlu0 %v209, 111
        %v247 = vpop.permute.xlu0 %246
        %248 = vrot.lane.b32.xlu0 %v210, 111
        %v249 = vpop.permute.xlu0 %248
        %vm250 = vcmask 908288
        %v251 = vsel %vm250, %v247, %v249
        %vm253 = vcmask 908288
        %v255 = vsel %vm253, %v249, 0
        %v257 = vsel %vm233, %v251, 0
        %v258 = vsel %vm234, %v255, 0
        %v261 = vrot.slane %v235, 6
        %v262 = vrot.slane %v236, 6
        %v264 = vrot.slane %v242, 4
        %v265 = vrot.slane %v245, 4
        %v268 = vrot.slane %v257, 2
        %v269 = vrot.slane %v258, 2
        %vm270 = vcmask 1041408
        %v273 = vsel %vm270, %v209, %v261
        %v276 = vsel %vm270, %v210, %v262
        %vm277 = vcmask 1043456
        %v279 = vsel %vm277, %v273, %v264
        %v281 = vsel %vm277, %v276, %v265
        %vm282 = vcmask 1045504
        %v284 = vsel %vm282, %v279, %v268
        %v287 = vsel %vm282, %v281, %v269
        %v289 = vld [vmem:[%s1] sm:$0xf]
        %v290 = vld [vmem:[%s1 + $0x4] sm:$0xf]
        %v291 = vld [vmem:[%s1 + $0x8] sm:$0xf]
        %v292 = vld [vmem:[%s1 + $0xc] sm:$0xf]
        %v297 = vunpack.c.l.b16 %v289
        %v298 = vunpack.c.l.b16 %v290
        %v299 = vunpack.c.l.b16 %v291
        %v300 = vunpack.c.l.b16 %v292
        %v301 = vpack.c.b16 %v298, %v297
        %v302 = vpack.c.b16 %v300, %v299
        %vm303 = vcmask 130048
        %v305 = vsel %vm303, %v301, 0
        %v308 = vsel %vm303, %v302, 0
        %310 = vmatprep.subr.bf16.mxu0 0
        %311 = vmatpush1.bf16.msra.mxu0 0
        %312 = vmatprep.subr.bf16.mxu0 0
        %313 = vmatpush1.bf16.msra.mxu0 0
        %314 = vmatprep.subr.bf16.mxu0 0
        %315 = vmatpush1.bf16.msra.mxu0 0
        %316 = vmatprep.subr.bf16.mxu0 0
        %317 = vmatpush1.bf16.msra.mxu0 0
        %318 = vmatprep.subr.bf16.mxu0 0
        %319 = vmatpush1.bf16.msra.mxu0 0
        %320 = vmatprep.subr.bf16.mxu0 0
        %321 = vmatpush1.bf16.msra.mxu0 0
        %322 = vmatprep.subr.bf16.mxu0 0
        %323 = vmatpush1.bf16.msra.mxu0 0
        %324 = vmatprep.subr.bf16.mxu0 %v287
        %325 = vmatpush1.bf16.msra.mxu0 %v284
        %326 = vmatprep.subr.bf16.mxu0 0
        %327 = vmatpush2.bf16.msra.mxu0 0
        %328 = vmatprep.subr.bf16.mxu0 0
        %329 = vmatpush2.bf16.msra.mxu0 0
        %330 = vmatprep.subr.bf16.mxu0 0
        %331 = vmatpush2.bf16.msra.mxu0 0
        %332 = vmatprep.subr.bf16.mxu0 0
        %333 = vmatpush2.bf16.msra.mxu0 0
        %334 = vmatprep.subr.bf16.mxu0 0
        %335 = vmatpush2.bf16.msra.mxu0 0
        %336 = vmatprep.subr.bf16.mxu0 0
        %337 = vmatpush2.bf16.msra.mxu0 0
        %338 = vmatprep.subr.bf16.mxu0 0
        %339 = vmatpush2.bf16.msra.mxu0 0
        %340 = vmatprep.subr.bf16.mxu0 0
        %341 = vmatpush2.bf16.msra.mxu0 0
        %342 = vmatprep.mubr.bf16.mxu0 0
        %343 = vmatmul.mubr.bf16.gmra.mxu0 %v305
        %v344 = vpop.f32.mrf.mxu0
        %v345 = vadd.f32 0.0, %v344
        %v346 = vpop.f32.mrf.mxu0
        %v347 = vadd.f32 0.0, %v346
        %v348 = vpop.f32.mrf.mxu0
        %v349 = vadd.f32 0.0, %v348
        %v350 = vpop.f32.mrf.mxu0
        %v351 = vadd.f32 0.0, %v350
        %352 = vmatprep.mubr.bf16.mxu0 0
        %353 = vmatmul.mubr.bf16.gmra.mxu0 %v308
        %v354 = vpop.f32.mrf.mxu0
        %v355 = vadd.f32 0.0, %v354
        %v356 = vpop.f32.mrf.mxu0
        %v357 = vadd.f32 0.0, %v356
        %v358 = vpop.f32.mrf.mxu0
        %v359 = vadd.f32 0.0, %v358
        %v360 = vpop.f32.mrf.mxu0
        %v361 = vadd.f32 0.0, %v360
        %362 = vdwg.mxu0
        %v363 = vadd.f32 %v345, %v347
        %364 = vadd.xlane.f32.xlu0 %v363
        %v365 = vpop.xlane.xlu0 %364
        %v366 = vadd.f32 %v349, %v351
        %367 = vadd.xlane.f32.xlu0 %v366
        %v368 = vpop.xlane.xlu0 %367
        %v369 = vadd.f32 %v355, %v357
        %370 = vadd.xlane.f32.xlu0 %v369
        %v371 = vpop.xlane.xlu0 %370
        %v372 = vadd.f32 %v359, %v361
        %373 = vadd.xlane.f32.xlu0 %v372
        %v374 = vpop.xlane.xlu0 %373
        %v375 = vmul.f32 %v345, %v345
        %v376 = vmul.f32 %v347, %v347
        %v377 = vmul.f32 %v349, %v349
        %v378 = vmul.f32 %v351, %v351
        %v379 = vmul.f32 %v355, %v355
        %v380 = vmul.f32 %v357, %v357
        %v381 = vmul.f32 %v359, %v359
        %v382 = vmul.f32 %v361, %v361
        %v383 = vadd.f32 %v375, %v376
        %384 = vadd.xlane.f32.xlu0 %v383
        %v385 = vpop.xlane.xlu0 %384
        %v386 = vadd.f32 %v377, %v378
        %387 = vadd.xlane.f32.xlu0 %v386
        %v388 = vpop.xlane.xlu0 %387
        %v389 = vadd.f32 %v379, %v380
        %390 = vadd.xlane.f32.xlu0 %v389
        %v391 = vpop.xlane.xlu0 %390
        %v392 = vadd.f32 %v381, %v382
        %393 = vadd.xlane.f32.xlu0 %v392
        %v394 = vpop.xlane.xlu0 %393
        %v395 = vadd.f32 %v365, %v368
        %v396 = vadd.f32 %v395, %v371
        %v397 = vadd.f32 %v396, %v374
        %v398 = vadd.f32 %v385, %v388
        %v399 = vadd.f32 %v398, %v391
        %v400 = vadd.f32 %v399, %v394
        %v401 = vmul.f32 %v397, 0.0009765625
        %v402 = vmul.f32 %v400, 0.0009765625
        %v403 = vmul.f32 %v401, %v401
        %v404 = vsub.f32 %v402, %v403
        %v405 = vadd.f32 %v404, 1e-05
        %v406 = vrsqrt.pop %v405
        %v407 = vld [vmem:[%s2] sm:$0xff]
        %v408 = vmul.f32 %v406, %v407
        %v409 = vmul.f32 %v401, %v408
        %411 = vrot.lane.b32.xlu0 %v409, 1
        %v412 = vpop.permute.xlu0 %411
        %v414 = vsub.f32 %v407, %v412
        %416 = vset.pattern.permute.xlu0 0
        %417 = vperm.xlu0 %416, %v408
        %v418 = vpop.permute.xlu0 %417
        %v420 = vmul.f32 %v345, %v418
        %v421 = vmul.f32 %v347, %v418
        %423 = vset.pattern.permute.xlu0 1
        %424 = vperm.xlu0 %423, %v414
        %v425 = vpop.permute.xlu0 %424
        %v427 = vadd.f32 %v420, %v425
        %v428 = vadd.f32 %v421, %v425
        %429 = vst [vmem:[%s163] sm:$0xff] %v427
        %430 = vst [vmem:[%s163 + $0x8] sm:$0xff] %v428
        %v431 = vmul.f32 %v349, %v418
        %v432 = vmul.f32 %v351, %v418
        %v433 = vadd.f32 %v431, %v425
        %v434 = vadd.f32 %v432, %v425
        %s435 = scalar_lea.vmem %s163, 16 [#allocation2]
        %436 = vst [vmem:[%s435] sm:$0xff] %v433
        %437 = vst [vmem:[%s435 + $0x8] sm:$0xff] %v434
        %v438 = vmul.f32 %v355, %v418
        %v439 = vmul.f32 %v357, %v418
        %v440 = vadd.f32 %v438, %v425
        %v441 = vadd.f32 %v439, %v425
        %s442 = scalar_lea.vmem %s163, 32 [#allocation2]
        %443 = vst [vmem:[%s442] sm:$0xff] %v440
        %444 = vst [vmem:[%s442 + $0x8] sm:$0xff] %v441
        %v445 = vmul.f32 %v359, %v418
        %v446 = vmul.f32 %v361, %v418
        %v447 = vadd.f32 %v445, %v425
        %v448 = vadd.f32 %v446, %v425
        %s449 = scalar_lea.vmem %s163, 48 [#allocation2]
        %450 = vst [vmem:[%s449] sm:$0xff] %v447
        %451 = vst [vmem:[%s449 + $0x8] sm:$0xff] %v448
        %s452 = sand.u32 %s93, 1
        %s453 = scalar_lea.sflag [#allocation3], %s452
        %s454 = sand.u32 %s93, 1
        %s455 = smul.addr %s454, 64
        %s456 = scalar_lea.vmem [#allocation2], %s455
        // Predicated region
        $region33: #{tpu_custom_call.1} parent=31 // pred_check
          %p457 = pneg %p103
        $region34: #{tpu_custom_call.1} parent=31 // pred_check_branch
          %459 = sbr.rel (%p457) target = $region36
        $region35: #{tpu_custom_call.1} parent=31 // pred_region
          %s461 = ssub.s32 1024, 1024
          %462 = vsyncadd %s453, %s461
          %s463 = smul.addr %s17, 8
          %s464 = smul.addr %s463, 128
          %s465 = scalar_lea.hbm %s3, %s464
          %s466 = sshll.u32 %s456, 4
          %s467 = int_to_ptr.vmem [resolvable:$true] %s466
          %472 = dma.vmem_to_hbm [thread:$0]  %s467, 1024, %s465, %s453, 256, 256, 16
        $region36: #{tpu_custom_call.1} parent=31 // pred_fallthru
          _
      $region32: #{tpu_custom_call.1} parent=5 // pred_fallthru
        _
      %p473 = scmp.le.s32.totalorder 2, %s12
      // Predicated region
      $region37: #{tpu_custom_call.1} parent=5 // pred_check
        %p474 = pneg %p473
      $region38: #{tpu_custom_call.1} parent=5 // pred_check_branch
        %476 = sbr.rel (%p474) target = $region40
      $region39: #{tpu_custom_call.1} parent=5 // pred_region
        %s477 = ssub.s32 %s12, 2
        // Predicated region
        $region41: #{tpu_custom_call.1} parent=39 // pred_check
          %p478 = pneg %p109
        $region42: #{tpu_custom_call.1} parent=39 // pred_check_branch
          %480 = sbr.rel (%p478) target = $region44
        $region43: #{tpu_custom_call.1} parent=39 // pred_region
          %s481 = sand.u32 %s94, 1
          %s482 = scalar_lea.sflag [#allocation3], %s481
          %s483 = sand.u32 %s94, 1
          %s484 = smul.addr %s483, 64
          %s485 = scalar_lea.vmem [#allocation2], %s484
          %486 = dma.done %s482, 1024
        $region44: #{tpu_custom_call.1} parent=39 // pred_fallthru
          _
      $region40: #{tpu_custom_call.1} parent=5 // pred_fallthru
        _
    $region6: #{tpu_custom_call.1} parent=1 // loop_footer
      %s16 = sadd.s32 1, %s12
    $region7: #{tpu_custom_call.1} parent=1 // loop_footer_branch
      %11 = sbr.rel target = $region3
    $region8: #{tpu_custom_call.1} parent=1 // loop_exit
      _
    %487 = vsyncpa [#allocation3], 1
    %s488 = scalar_lea.sflag [#allocation3], 1
    %489 = vsyncpa %s488, 1

</llo_original>
